<compile_context>
chip_gen: v6e
topology: v6e:2x2x1
jax: 0.10.0
libtpu: 0.0.40
codegen_flags: <defaults>
</compile_context>

<pallas_src>
import functools

import jax
import jax.numpy as jnp
from jax.experimental import pallas as pl
from jax.experimental.pallas import tpu as pltpu

NUM_FEATURES = 784
NUM_HIDDEN_1 = 32
LEAKY_SLOPE = 0.01  # torch.nn.functional.leaky_relu default negative_slope

LANE = 128
SUBLANE = 8


def _round_up(n: int, m: int) -> int:
    return ((n + m - 1) // m) * m


def _default_block_batch() -> int:
    """Generation-aware batch-tile cap: 4096 on 128 MiB VMEM (v5e/v6e), 2048 on
    64 MiB VMEM (v7x).  Conservative fallback if the query is unavailable."""
    try:
        vmem_bytes = pltpu.get_tpu_info().vmem_capacity_bytes
    except Exception:
        return 2048
    return 4096 if vmem_bytes >= (100 << 20) else 2048


def autoencoder_kernel(x_ref, w1_ref, b1_ref, w2_ref, b2_ref, o_ref):
    # encoder: linear_1 (bf16 MXU operands, f32 accumulation) + leaky_relu
    x = x_ref[...].astype(jnp.bfloat16)
    h = jnp.dot(x, w1_ref[...], preferred_element_type=jnp.float32) + b1_ref[...]
    h = jnp.where(h > 0, h, LEAKY_SLOPE * h)
    # decoder: linear_2 + sigmoid (EUP logistic path)
    logits = (
        jnp.dot(h.astype(jnp.bfloat16), w2_ref[...], preferred_element_type=jnp.float32)
        + b2_ref[...]
    )
    o_ref[...] = jax.nn.sigmoid(logits).astype(o_ref.dtype)


def prepare_params(w1, b1, w2, b2):
    """Pad hidden dim 32 -> 128 (zero padding is mathematically transparent:
    padded hidden cols get bias 0, leaky_relu(0)=0, and hit zero rows of w2)
    and cast weights to bf16.  Call once at parameter-load time, NOT per step."""
    F, H = w1.shape
    H_pad = _round_up(H, LANE)
    w1_p = jnp.zeros((F, H_pad), jnp.bfloat16).at[:, :H].set(w1.astype(jnp.bfloat16))
    b1_p = jnp.zeros((1, H_pad), jnp.float32).at[:, :H].set(b1.astype(jnp.float32).reshape(1, H))
    w2_p = jnp.zeros((H_pad, F), jnp.bfloat16).at[:H, :].set(w2.astype(jnp.bfloat16))
    b2_p = b2.astype(jnp.float32).reshape(1, F)
    return w1_p, b1_p, w2_p, b2_p


@functools.partial(jax.jit, static_argnames=("block_batch",))
def _autoencoder_forward_impl(x, w1_p, b1_p, w2_p, b2_p, *, block_batch):
    B, F = x.shape
    H_pad = w1_p.shape[1]
    x = x.astype(jnp.float32)

    # Batch tile: multiple of 8 sublanes, capped generation-aware; when the
    # whole batch fits one tile, split into >=2 tiles so v7x's two TensorCores
    # both get work under dimension_semantics=("parallel",).
    TB = min(block_batch, _round_up(B, SUBLANE))
    if B > SUBLANE and _round_up(B, SUBLANE) <= block_batch:
        TB = _round_up(-(-B // 2), SUBLANE)
    B_pad = _round_up(B, TB)
    num_tiles = B_pad // TB

    if B_pad != B:
        # Batch-only pad (no F padding).  Only hit when B % TB != 0.
        x = jnp.pad(x, ((0, B_pad - B), (0, 0)))

    # VMEM budget: double-buffered x/out tiles + (conservatively double-counted)
    # resident bf16 weights / f32 biases + headroom for compiler scratch.
    tile_bytes = TB * F * 4
    weight_bytes = (w1_p.size + w2_p.size) * 2 + (b1_p.size + b2_p.size) * 4
    vmem_limit = 4 * tile_bytes + 2 * weight_bytes + (8 << 20)

    cost = pl.CostEstimate(
        flops=4 * B_pad * F * H_pad,                  # two matmuls (padded H)
        transcendentals=B_pad * F,                    # sigmoid exp
        bytes_accessed=2 * B_pad * F * 4 + weight_bytes,
    )

    out = pl.pallas_call(
        autoencoder_kernel,
        out_shape=jax.ShapeDtypeStruct((B_pad, F), jnp.float32),
        grid=(num_tiles,),
        in_specs=[
            pl.BlockSpec((TB, F), lambda i: (i, 0)),              # x: batch-tiled
            pl.BlockSpec((F, H_pad), lambda i: (0, 0)),           # w1: resident
            pl.BlockSpec((1, H_pad), lambda i: (0, 0)),           # b1: resident
            pl.BlockSpec((H_pad, F), lambda i: (0, 0)),           # w2: resident
            pl.BlockSpec((1, F), lambda i: (0, 0)),               # b2: resident
        ],
        out_specs=pl.BlockSpec((TB, F), lambda i: (i, 0)),
        compiler_params=pltpu.CompilerParams(
            dimension_semantics=("parallel",),
            vmem_limit_bytes=int(vmem_limit),
        ),
        cost_estimate=cost,
    )(x, w1_p, b1_p, w2_p, b2_p)

    return out[:B] if B_pad != B else out


def autoencoder_forward(x, params, *, block_batch=None):
    """x: [B, 784] f32; params = prepare_params(w1, b1, w2, b2) with weights
    stored pre-transposed as [in, out] so the kernel computes x @ W."""
    if block_batch is None:
        block_batch = _default_block_batch()
    return _autoencoder_forward_impl(x, *params, block_batch=block_batch)


def reference_forward(x, w1, b1, w2, b2):
    h = x @ w1 + b1
    h = jnp.where(h > 0, h, LEAKY_SLOPE * h)
    logits = h @ w2 + b2
    return jax.nn.sigmoid(logits)


if __name__ == "__main__":
    key = jax.random.PRNGKey(0)
    k_x, k_w1, k_w2 = jax.random.split(key, 3)

    B = 8
    x = jax.random.uniform(k_x, (B, NUM_FEATURES), dtype=jnp.float32)

    # Deterministic init matching the module: weights ~ N(0, 0.1), biases = 0.
    # PyTorch Linear stores weight as [out, in]; we keep [in, out] (pre-transposed).
    w1 = 0.1 * jax.random.normal(k_w1, (NUM_FEATURES, NUM_HIDDEN_1), dtype=jnp.float32)
    b1 = jnp.zeros((1, NUM_HIDDEN_1), dtype=jnp.float32)
    w2 = 0.1 * jax.random.normal(k_w2, (NUM_HIDDEN_1, NUM_FEATURES), dtype=jnp.float32)
    b2 = jnp.zeros((1, NUM_FEATURES), dtype=jnp.float32)

    params = prepare_params(w1, b1, w2, b2)  # one-time padding + bf16 cast

    out = autoencoder_forward(x, params)
    out = jax.block_until_ready(out)

    ref = reference_forward(x, w1, b1, w2, b2)
    assert out.shape == (B, NUM_FEATURES)
    # bf16 MXU operands (f32 accumulation): loosen tolerance vs f32 reference.
    assert jnp.allclose(out, ref, atol=1e-2, rtol=1e-2), "mismatch vs reference"

    print("KERNEL_OK")
</pallas_src>

<mosaic_0001>
module attributes {stable_mosaic.version = 11 : i64} {
  func.func @autoencoder_kernel(%arg0: i32, %arg1: memref<8x784xf32, #tpu.memory_space<vmem>>, %arg2: memref<784x128xbf16, #tpu.memory_space<vmem>>, %arg3: memref<1x128xf32, #tpu.memory_space<vmem>>, %arg4: memref<128x784xbf16, #tpu.memory_space<vmem>>, %arg5: memref<1x784xf32, #tpu.memory_space<vmem>>, %arg6: memref<8x784xf32, #tpu.memory_space<vmem>>) attributes {dimension_semantics = [#tpu.dimension_semantics<parallel>], iteration_bounds = array<i64: 1>, scalar_prefetch = 0 : i64, scratch_operands = 0 : i64, tpu.core_type = #tpu.core_type<tc>, window_params = [{transform_indices = @transform_0, window_bounds = array<i64: 8, 784>}, {pipeline_mode = #tpu.pipeline_mode<synchronous>, transform_indices = @transform_1, window_bounds = array<i64: 784, 128>}, {pipeline_mode = #tpu.pipeline_mode<synchronous>, transform_indices = @transform_2, window_bounds = array<i64: 1, 128>}, {pipeline_mode = #tpu.pipeline_mode<synchronous>, transform_indices = @transform_3, window_bounds = array<i64: 128, 784>}, {pipeline_mode = #tpu.pipeline_mode<synchronous>, transform_indices = @transform_4, window_bounds = array<i64: 1, 784>}, {transform_indices = @transform_5, window_bounds = array<i64: 8, 784>}]} {
    %c0 = arith.constant 0 : index
    %c0_0 = arith.constant 0 : index
    %0 = vector.load %arg1[%c0, %c0_0] : memref<8x784xf32, #tpu.memory_space<vmem>>, vector<8x784xf32>
    %1 = arith.truncf %0 : vector<8x784xf32> to vector<8x784xbf16>
    %c0_1 = arith.constant 0 : index
    %c0_2 = arith.constant 0 : index
    %2 = vector.load %arg2[%c0_1, %c0_2] : memref<784x128xbf16, #tpu.memory_space<vmem>>, vector<784x128xbf16>
    %cst = arith.constant dense<0.000000e+00> : vector<8x128xf32>
    %3 = tpu.matmul %1, %2, %cst {dimension_numbers = #tpu.dot_dimension_numbers<[1], [0], [0], [1], [0, 0, 1, 1], [], []>} : vector<8x784xbf16>, vector<784x128xbf16>, vector<8x128xf32> -> vector<8x128xf32>
    %c0_3 = arith.constant 0 : index
    %c0_4 = arith.constant 0 : index
    %4 = vector.load %arg3[%c0_3, %c0_4] : memref<1x128xf32, #tpu.memory_space<vmem>>, vector<1x128xf32>
    %5 = vector.broadcast %4 : vector<1x128xf32> to vector<8x128xf32>
    %6 = arith.addf %3, %5 : vector<8x128xf32>
    %cst_5 = arith.constant 0.000000e+00 : f32
    %7 = vector.broadcast %cst_5 : f32 to vector<8x128xf32>
    %8 = arith.cmpf ogt, %6, %7 : vector<8x128xf32>
    %cst_6 = arith.constant 0.00999999977 : f32
    %9 = vector.broadcast %cst_6 : f32 to vector<8x128xf32>
    %10 = arith.mulf %9, %6 : vector<8x128xf32>
    %11 = arith.select %8, %6, %10 : vector<8x128xi1>, vector<8x128xf32>
    %12 = arith.truncf %11 : vector<8x128xf32> to vector<8x128xbf16>
    %c0_7 = arith.constant 0 : index
    %c0_8 = arith.constant 0 : index
    %13 = vector.load %arg4[%c0_7, %c0_8] : memref<128x784xbf16, #tpu.memory_space<vmem>>, vector<128x784xbf16>
    %cst_9 = arith.constant dense<0.000000e+00> : vector<8x784xf32>
    %14 = tpu.matmul %12, %13, %cst_9 {dimension_numbers = #tpu.dot_dimension_numbers<[1], [0], [0], [1], [0, 0, 1, 1], [], []>} : vector<8x128xbf16>, vector<128x784xbf16>, vector<8x784xf32> -> vector<8x784xf32>
    %c0_10 = arith.constant 0 : index
    %c0_11 = arith.constant 0 : index
    %15 = vector.load %arg5[%c0_10, %c0_11] : memref<1x784xf32, #tpu.memory_space<vmem>>, vector<1x784xf32>
    %16 = vector.broadcast %15 : vector<1x784xf32> to vector<8x784xf32>
    %17 = arith.addf %14, %16 : vector<8x784xf32>
    %18 = arith.negf %17 : vector<8x784xf32>
    %19 = math.exp %18 : vector<8x784xf32>
    %cst_12 = arith.constant 1.000000e+00 : f32
    %20 = vector.broadcast %cst_12 : f32 to vector<8x784xf32>
    %21 = arith.addf %20, %19 : vector<8x784xf32>
    %22 = arith.divf %20, %21 : vector<8x784xf32>
    %c0_13 = arith.constant 0 : index
    %c0_14 = arith.constant 0 : index
    %23 = vector.load %arg6[%c0_13, %c0_14] : memref<8x784xf32, #tpu.memory_space<vmem>>, vector<8x784xf32>
    tpu.vector_store %arg6[%c0_13, %c0_14], %22 {strides = array<i32>} : memref<8x784xf32, #tpu.memory_space<vmem>>, vector<8x784xf32>,
    return
  }
  func.func @transform_0(%arg0: i32) -> (i32, i32) {
    %c0_i32 = arith.constant 0 : i32
    %c0_i32_0 = arith.constant 0 : i32
    return %arg0, %c0_i32 : i32, i32
  }
  func.func @transform_1(%arg0: i32) -> (i32, i32) {
    %c0_i32 = arith.constant 0 : i32
    %c0_i32_0 = arith.constant 0 : i32
    %c0_i32_1 = arith.constant 0 : i32
    return %c0_i32, %c0_i32_0 : i32, i32
  }
  func.func @transform_2(%arg0: i32) -> (i32, i32) {
    %c0_i32 = arith.constant 0 : i32
    %c0_i32_0 = arith.constant 0 : i32
    %c0_i32_1 = arith.constant 0 : i32
    return %c0_i32, %c0_i32_0 : i32, i32
  }
  func.func @transform_3(%arg0: i32) -> (i32, i32) {
    %c0_i32 = arith.constant 0 : i32
    %c0_i32_0 = arith.constant 0 : i32
    %c0_i32_1 = arith.constant 0 : i32
    return %c0_i32, %c0_i32_0 : i32, i32
  }
  func.func @transform_4(%arg0: i32) -> (i32, i32) {
    %c0_i32 = arith.constant 0 : i32
    %c0_i32_0 = arith.constant 0 : i32
    %c0_i32_1 = arith.constant 0 : i32
    return %c0_i32, %c0_i32_0 : i32, i32
  }
  func.func @transform_5(%arg0: i32) -> (i32, i32) {
    %c0_i32 = arith.constant 0 : i32
    %c0_i32_0 = arith.constant 0 : i32
    return %arg0, %c0_i32 : i32, i32
  }
}

</mosaic_0001>

<llo_original>
// kernel: _autoencoder_forward_impl.1
$region0: #{_autoencoder_forward_impl.1}
  #allocation0 [shape = 'u32[]', space=smem, size = 0x4, offset = 0x4, fixed_abs, tag = 'smem constant byte address 0x4 - core index']
  #allocation1 [shape = 'u32[144,128]{1,0:T(1,128)}', space=vmem, size = 0x12000, scoped, tag = 'internal scratch']
  %s0 = inlined_call_operand.vmem [shape: f32[8,784], index: 0, kind: input, shape index: {}]
  %s1 = inlined_call_operand.vmem [shape: bf16[784,128], index: 1, kind: input, shape index: {}]
  %s2 = inlined_call_operand.vmem [shape: f32[1,128], index: 2, kind: input, shape index: {}]
  %s3 = inlined_call_operand.vmem [shape: bf16[128,784], index: 3, kind: input, shape index: {}]
  %s4 = inlined_call_operand.vmem [shape: f32[1,784], index: 4, kind: input, shape index: {}]
  %s5 = inlined_call_operand.hbm [shape: f32[8,784], index: 5, kind: output, shape index: {}]
  %s6 = sld [smem:[#allocation0]]
  $region30: #{_autoencoder_forward_impl.1} parent=0
    _
  %s8 = ssub.s32 1, %s6
  %s9 = scalar_select 0, %s8, %s6
  $region1: #{_autoencoder_forward_impl.1} parent=0
    #allocation2 [shape = 'u8[28672]{0}', space=vmem, size = 0x7000, scoped, tag = 'output window, operand 0, single buffered']
    #allocation3 [shape = 's32[1]{0}', space=sflag, size = 0x4, scoped, tag = 'scoped memory for _autoencoder_forward_impl.1']
    %10 = vsyncpa [#allocation3], 0
    // Predicated region
    $region2: #{_autoencoder_forward_impl.1} parent=1 // pred_check
      _
    $region3: #{_autoencoder_forward_impl.1} parent=1 // pred_check_branch
      %12 = sbr.rel (0) target = $region5
    $region4: #{_autoencoder_forward_impl.1} parent=1 // pred_region
      _
    $region5: #{_autoencoder_forward_impl.1} parent=1 // pred_fallthru
      _
    // Predicated region
    $region6: #{_autoencoder_forward_impl.1} parent=1 // pred_check
      _
    $region7: #{_autoencoder_forward_impl.1} parent=1 // pred_check_branch
      %14 = sbr.rel (0) target = $region9
    $region8: #{_autoencoder_forward_impl.1} parent=1 // pred_region
      _
    $region9: #{_autoencoder_forward_impl.1} parent=1 // pred_fallthru
      _
    // Predicated region
    $region10: #{_autoencoder_forward_impl.1} parent=1 // pred_check
      _
    $region11: #{_autoencoder_forward_impl.1} parent=1 // pred_check_branch
      %16 = sbr.rel (0) target = $region13
    $region12: #{_autoencoder_forward_impl.1} parent=1 // pred_region
      _
    $region13: #{_autoencoder_forward_impl.1} parent=1 // pred_fallthru
      _
    // Predicated region
    $region14: #{_autoencoder_forward_impl.1} parent=1 // pred_check
      _
    $region15: #{_autoencoder_forward_impl.1} parent=1 // pred_check_branch
      %18 = sbr.rel (0) target = $region17
    $region16: #{_autoencoder_forward_impl.1} parent=1 // pred_region
      _
    $region17: #{_autoencoder_forward_impl.1} parent=1 // pred_fallthru
      _
    // Predicated region
    $region18: #{_autoencoder_forward_impl.1} parent=1 // pred_check
      _
    $region19: #{_autoencoder_forward_impl.1} parent=1 // pred_check_branch
      %20 = sbr.rel (0) target = $region21
    $region20: #{_autoencoder_forward_impl.1} parent=1 // pred_region
      _
    $region21: #{_autoencoder_forward_impl.1} parent=1 // pred_fallthru
      _
    %v22 = vld [vmem:[%s0] sm:$0xff]
    %v23 = vld [vmem:[%s0 + $0x8] sm:$0xff]
    %v24 = vld [vmem:[%s0 + $0x10] sm:$0xff]
    %v25 = vld [vmem:[%s0 + $0x18] sm:$0xff]
    %v26 = vld [vmem:[%s0 + $0x20] sm:$0xff]
    %v27 = vld [vmem:[%s0 + $0x28] sm:$0xff]
    %v28 = vld [vmem:[%s0 + $0x30] sm:$0xff]
    %v29 = vpack.c.bf16 %v22, %v22
    %v30 = vpack.c.bf16 %v23, %v23
    %v31 = vpack.c.bf16 %v24, %v24
    %v32 = vpack.c.bf16 %v25, %v25
    %v33 = vpack.c.bf16 %v26, %v26
    %v34 = vpack.c.bf16 %v27, %v27
    %v35 = vpack.c.bf16 %v28, %v28
    %v36 = vld [vmem:[%s1] sm:$0xf]
    %v37 = vld [vmem:[%s1 + $0x4] sm:$0xf]
    %v38 = vld [vmem:[%s1 + $0x8] sm:$0xf]
    %v39 = vld [vmem:[%s1 + $0xc] sm:$0xf]
    %v40 = vld [vmem:[%s1 + $0x10] sm:$0xf]
    %v41 = vld [vmem:[%s1 + $0x14] sm:$0xf]
    %v42 = vld [vmem:[%s1 + $0x18] sm:$0xf]
    %v43 = vld [vmem:[%s1 + $0x1c] sm:$0xf]
    %v44 = vld [vmem:[%s1 + $0x20] sm:$0xf]
    %v45 = vld [vmem:[%s1 + $0x24] sm:$0xf]
    %v46 = vld [vmem:[%s1 + $0x28] sm:$0xf]
    %v47 = vld [vmem:[%s1 + $0x2c] sm:$0xf]
    %v48 = vld [vmem:[%s1 + $0x30] sm:$0xf]
    %v49 = vld [vmem:[%s1 + $0x34] sm:$0xf]
    %v50 = vld [vmem:[%s1 + $0x38] sm:$0xf]
    %v51 = vld [vmem:[%s1 + $0x3c] sm:$0xf]
    %v52 = vld [vmem:[%s1 + $0x40] sm:$0xf]
    %v53 = vld [vmem:[%s1 + $0x44] sm:$0xf]
    %v54 = vld [vmem:[%s1 + $0x48] sm:$0xf]
    %v55 = vld [vmem:[%s1 + $0x4c] sm:$0xf]
    %v56 = vld [vmem:[%s1 + $0x50] sm:$0xf]
    %v57 = vld [vmem:[%s1 + $0x54] sm:$0xf]
    %v58 = vld [vmem:[%s1 + $0x58] sm:$0xf]
    %v59 = vld [vmem:[%s1 + $0x5c] sm:$0xf]
    %v60 = vld [vmem:[%s1 + $0x60] sm:$0xf]
    %v61 = vld [vmem:[%s1 + $0x64] sm:$0xf]
    %v62 = vld [vmem:[%s1 + $0x68] sm:$0xf]
    %v63 = vld [vmem:[%s1 + $0x6c] sm:$0xf]
    %v64 = vld [vmem:[%s1 + $0x70] sm:$0xf]
    %v65 = vld [vmem:[%s1 + $0x74] sm:$0xf]
    %v66 = vld [vmem:[%s1 + $0x78] sm:$0xf]
    %v67 = vld [vmem:[%s1 + $0x7c] sm:$0xf]
    %v68 = vld [vmem:[%s1 + $0x80] sm:$0xf]
    %v69 = vld [vmem:[%s1 + $0x84] sm:$0xf]
    %v70 = vld [vmem:[%s1 + $0x88] sm:$0xf]
    %v71 = vld [vmem:[%s1 + $0x8c] sm:$0xf]
    %v72 = vld [vmem:[%s1 + $0x90] sm:$0xf]
    %v73 = vld [vmem:[%s1 + $0x94] sm:$0xf]
    %v74 = vld [vmem:[%s1 + $0x98] sm:$0xf]
    %v75 = vld [vmem:[%s1 + $0x9c] sm:$0xf]
    %v76 = vld [vmem:[%s1 + $0xa0] sm:$0xf]
    %v77 = vld [vmem:[%s1 + $0xa4] sm:$0xf]
    %v78 = vld [vmem:[%s1 + $0xa8] sm:$0xf]
    %v79 = vld [vmem:[%s1 + $0xac] sm:$0xf]
    %v80 = vld [vmem:[%s1 + $0xb0] sm:$0xf]
    %v81 = vld [vmem:[%s1 + $0xb4] sm:$0xf]
    %v82 = vld [vmem:[%s1 + $0xb8] sm:$0xf]
    %v83 = vld [vmem:[%s1 + $0xbc] sm:$0xf]
    %v84 = vld [vmem:[%s1 + $0xc0] sm:$0xf]
    %v85 = vld [vmem:[%s1 + $0xc4] sm:$0xf]
    %v86 = vld [vmem:[%s1 + $0xc8] sm:$0xf]
    %v87 = vld [vmem:[%s1 + $0xcc] sm:$0xf]
    %v88 = vld [vmem:[%s1 + $0xd0] sm:$0xf]
    %v89 = vld [vmem:[%s1 + $0xd4] sm:$0xf]
    %v90 = vld [vmem:[%s1 + $0xd8] sm:$0xf]
    %v91 = vld [vmem:[%s1 + $0xdc] sm:$0xf]
    %v92 = vld [vmem:[%s1 + $0xe0] sm:$0xf]
    %v93 = vld [vmem:[%s1 + $0xe4] sm:$0xf]
    %v94 = vld [vmem:[%s1 + $0xe8] sm:$0xf]
    %v95 = vld [vmem:[%s1 + $0xec] sm:$0xf]
    %v96 = vld [vmem:[%s1 + $0xf0] sm:$0xf]
    %v97 = vld [vmem:[%s1 + $0xf4] sm:$0xf]
    %v98 = vld [vmem:[%s1 + $0xf8] sm:$0xf]
    %v99 = vld [vmem:[%s1 + $0xfc] sm:$0xf]
    %v100 = vld [vmem:[%s1 + $0x100] sm:$0xf]
    %v101 = vld [vmem:[%s1 + $0x104] sm:$0xf]
    %v102 = vld [vmem:[%s1 + $0x108] sm:$0xf]
    %v103 = vld [vmem:[%s1 + $0x10c] sm:$0xf]
    %v104 = vld [vmem:[%s1 + $0x110] sm:$0xf]
    %v105 = vld [vmem:[%s1 + $0x114] sm:$0xf]
    %v106 = vld [vmem:[%s1 + $0x118] sm:$0xf]
    %v107 = vld [vmem:[%s1 + $0x11c] sm:$0xf]
    %v108 = vld [vmem:[%s1 + $0x120] sm:$0xf]
    %v109 = vld [vmem:[%s1 + $0x124] sm:$0xf]
    %v110 = vld [vmem:[%s1 + $0x128] sm:$0xf]
    %v111 = vld [vmem:[%s1 + $0x12c] sm:$0xf]
    %v112 = vld [vmem:[%s1 + $0x130] sm:$0xf]
    %v113 = vld [vmem:[%s1 + $0x134] sm:$0xf]
    %v114 = vld [vmem:[%s1 + $0x138] sm:$0xf]
    %v115 = vld [vmem:[%s1 + $0x13c] sm:$0xf]
    %v116 = vld [vmem:[%s1 + $0x140] sm:$0xf]
    %v117 = vld [vmem:[%s1 + $0x144] sm:$0xf]
    %v118 = vld [vmem:[%s1 + $0x148] sm:$0xf]
    %v119 = vld [vmem:[%s1 + $0x14c] sm:$0xf]
    %v120 = vld [vmem:[%s1 + $0x150] sm:$0xf]
    %v121 = vld [vmem:[%s1 + $0x154] sm:$0xf]
    %v122 = vld [vmem:[%s1 + $0x158] sm:$0xf]
    %v123 = vld [vmem:[%s1 + $0x15c] sm:$0xf]
    %v124 = vld [vmem:[%s1 + $0x160] sm:$0xf]
    %v125 = vld [vmem:[%s1 + $0x164] sm:$0xf]
    %v126 = vld [vmem:[%s1 + $0x168] sm:$0xf]
    %v127 = vld [vmem:[%s1 + $0x16c] sm:$0xf]
    %v128 = vld [vmem:[%s1 + $0x170] sm:$0xf]
    %v129 = vld [vmem:[%s1 + $0x174] sm:$0xf]
    %v130 = vld [vmem:[%s1 + $0x178] sm:$0xf]
    %v131 = vld [vmem:[%s1 + $0x17c] sm:$0xf]
    %v132 = vld [vmem:[%s1 + $0x180] sm:$0xf]
    %v133 = vld [vmem:[%s1 + $0x184] sm:$0xf]
    %v134 = vld [vmem:[%s2] sm:$0x1]
    %v136 = vlaneseq
    %v137 = vshrl.u32 %v136, 7
    %v138 = vsub.s32 0, %v137
    %v139 = vrot.slane %v134, %v138
    %v239 = vunpack.c.l.b16 %v36
    %v240 = vunpack.c.l.b16 %v37
    %v241 = vunpack.c.l.b16 %v38
    %v242 = vunpack.c.l.b16 %v39
    %v243 = vunpack.c.l.b16 %v40
    %v244 = vunpack.c.l.b16 %v41
    %v245 = vunpack.c.l.b16 %v42
    %v246 = vunpack.c.l.b16 %v43
    %v247 = vunpack.c.l.b16 %v44
    %v248 = vunpack.c.l.b16 %v45
    %v249 = vunpack.c.l.b16 %v46
    %v250 = vunpack.c.l.b16 %v47
    %v251 = vunpack.c.l.b16 %v48
    %v252 = vunpack.c.l.b16 %v49
    %v253 = vunpack.c.l.b16 %v50
    %v254 = vunpack.c.l.b16 %v51
    %v255 = vunpack.c.l.b16 %v52
    %v256 = vunpack.c.l.b16 %v53
    %v257 = vunpack.c.l.b16 %v54
    %v258 = vunpack.c.l.b16 %v55
    %v259 = vunpack.c.l.b16 %v56
    %v260 = vunpack.c.l.b16 %v57
    %v261 = vunpack.c.l.b16 %v58
    %v262 = vunpack.c.l.b16 %v59
    %v263 = vunpack.c.l.b16 %v60
    %v264 = vunpack.c.l.b16 %v61
    %v265 = vunpack.c.l.b16 %v62
    %v266 = vunpack.c.l.b16 %v63
    %v267 = vunpack.c.l.b16 %v64
    %v268 = vunpack.c.l.b16 %v65
    %v269 = vunpack.c.l.b16 %v66
    %v270 = vunpack.c.l.b16 %v67
    %v271 = vunpack.c.l.b16 %v68
    %v272 = vunpack.c.l.b16 %v69
    %v273 = vunpack.c.l.b16 %v70
    %v274 = vunpack.c.l.b16 %v71
    %v275 = vunpack.c.l.b16 %v72
    %v276 = vunpack.c.l.b16 %v73
    %v277 = vunpack.c.l.b16 %v74
    %v278 = vunpack.c.l.b16 %v75
    %v279 = vunpack.c.l.b16 %v76
    %v280 = vunpack.c.l.b16 %v77
    %v281 = vunpack.c.l.b16 %v78
    %v282 = vunpack.c.l.b16 %v79
    %v283 = vunpack.c.l.b16 %v80
    %v284 = vunpack.c.l.b16 %v81
    %v285 = vunpack.c.l.b16 %v82
    %v286 = vunpack.c.l.b16 %v83
    %v287 = vunpack.c.l.b16 %v84
    %v288 = vunpack.c.l.b16 %v85
    %v289 = vunpack.c.l.b16 %v86
    %v290 = vunpack.c.l.b16 %v87
    %v291 = vunpack.c.l.b16 %v88
    %v292 = vunpack.c.l.b16 %v89
    %v293 = vunpack.c.l.b16 %v90
    %v294 = vunpack.c.l.b16 %v91
    %v295 = vunpack.c.l.b16 %v92
    %v296 = vunpack.c.l.b16 %v93
    %v297 = vunpack.c.l.b16 %v94
    %v298 = vunpack.c.l.b16 %v95
    %v299 = vunpack.c.l.b16 %v96
    %v300 = vunpack.c.l.b16 %v97
    %v301 = vunpack.c.l.b16 %v98
    %v302 = vunpack.c.l.b16 %v99
    %v303 = vunpack.c.l.b16 %v100
    %v304 = vunpack.c.l.b16 %v101
    %v305 = vunpack.c.l.b16 %v102
    %v306 = vunpack.c.l.b16 %v103
    %v307 = vunpack.c.l.b16 %v104
    %v308 = vunpack.c.l.b16 %v105
    %v309 = vunpack.c.l.b16 %v106
    %v310 = vunpack.c.l.b16 %v107
    %v311 = vunpack.c.l.b16 %v108
    %v312 = vunpack.c.l.b16 %v109
    %v313 = vunpack.c.l.b16 %v110
    %v314 = vunpack.c.l.b16 %v111
    %v315 = vunpack.c.l.b16 %v112
    %v316 = vunpack.c.l.b16 %v113
    %v317 = vunpack.c.l.b16 %v114
    %v318 = vunpack.c.l.b16 %v115
    %v319 = vunpack.c.l.b16 %v116
    %v320 = vunpack.c.l.b16 %v117
    %v321 = vunpack.c.l.b16 %v118
    %v322 = vunpack.c.l.b16 %v119
    %v323 = vunpack.c.l.b16 %v120
    %v324 = vunpack.c.l.b16 %v121
    %v325 = vunpack.c.l.b16 %v122
    %v326 = vunpack.c.l.b16 %v123
    %v327 = vunpack.c.l.b16 %v124
    %v328 = vunpack.c.l.b16 %v125
    %v329 = vunpack.c.l.b16 %v126
    %v330 = vunpack.c.l.b16 %v127
    %v331 = vunpack.c.l.b16 %v128
    %v332 = vunpack.c.l.b16 %v129
    %v333 = vunpack.c.l.b16 %v130
    %v334 = vunpack.c.l.b16 %v131
    %v335 = vunpack.c.l.b16 %v132
    %v336 = vunpack.c.l.b16 %v133
    %v337 = vpack.c.b16 %v240, %v239
    %v338 = vpack.c.b16 %v242, %v241
    %v339 = vpack.c.b16 %v244, %v243
    %v340 = vpack.c.b16 %v246, %v245
    %v341 = vpack.c.b16 %v248, %v247
    %v342 = vpack.c.b16 %v250, %v249
    %v343 = vpack.c.b16 %v252, %v251
    %v344 = vpack.c.b16 %v254, %v253
    %v345 = vpack.c.b16 %v256, %v255
    %v346 = vpack.c.b16 %v258, %v257
    %v347 = vpack.c.b16 %v260, %v259
    %v348 = vpack.c.b16 %v262, %v261
    %v349 = vpack.c.b16 %v264, %v263
    %v350 = vpack.c.b16 %v266, %v265
    %v351 = vpack.c.b16 %v268, %v267
    %v352 = vpack.c.b16 %v270, %v269
    %v353 = vpack.c.b16 %v272, %v271
    %v354 = vpack.c.b16 %v274, %v273
    %v355 = vpack.c.b16 %v276, %v275
    %v356 = vpack.c.b16 %v278, %v277
    %v357 = vpack.c.b16 %v280, %v279
    %v358 = vpack.c.b16 %v282, %v281
    %v359 = vpack.c.b16 %v284, %v283
    %v360 = vpack.c.b16 %v286, %v285
    %v361 = vpack.c.b16 %v288, %v287
    %v362 = vpack.c.b16 %v290, %v289
    %v363 = vpack.c.b16 %v292, %v291
    %v364 = vpack.c.b16 %v294, %v293
    %v365 = vpack.c.b16 %v296, %v295
    %v366 = vpack.c.b16 %v298, %v297
    %v367 = vpack.c.b16 %v300, %v299
    %v368 = vpack.c.b16 %v302, %v301
    %v369 = vpack.c.b16 %v304, %v303
    %v370 = vpack.c.b16 %v306, %v305
    %v371 = vpack.c.b16 %v308, %v307
    %v372 = vpack.c.b16 %v310, %v309
    %v373 = vpack.c.b16 %v312, %v311
    %v374 = vpack.c.b16 %v314, %v313
    %v375 = vpack.c.b16 %v316, %v315
    %v376 = vpack.c.b16 %v318, %v317
    %v377 = vpack.c.b16 %v320, %v319
    %v378 = vpack.c.b16 %v322, %v321
    %v379 = vpack.c.b16 %v324, %v323
    %v380 = vpack.c.b16 %v326, %v325
    %v381 = vpack.c.b16 %v328, %v327
    %v382 = vpack.c.b16 %v330, %v329
    %v383 = vpack.c.b16 %v332, %v331
    %v384 = vpack.c.b16 %v334, %v333
    %v385 = vpack.c.b16 %v336, %v335
    %vm435 = vcmask 130048
    %v437 = vsel %vm435, %v35, 0
    %439 = vmatprep.subr.bf16.mxu0 0
    %440 = vmatpush1.bf16.msra.mxu0 %v344
    %441 = vmatprep.subr.bf16.mxu0 0
    %442 = vmatpush1.bf16.msra.mxu0 %v343
    %443 = vmatprep.subr.bf16.mxu0 0
    %444 = vmatpush1.bf16.msra.mxu0 %v342
    %445 = vmatprep.subr.bf16.mxu0 0
    %446 = vmatpush1.bf16.msra.mxu0 %v341
    %447 = vmatprep.subr.bf16.mxu0 0
    %448 = vmatpush1.bf16.msra.mxu0 %v340
    %449 = vmatprep.subr.bf16.mxu0 0
    %450 = vmatpush1.bf16.msra.mxu0 %v339
    %451 = vmatprep.subr.bf16.mxu0 0
    %452 = vmatpush1.bf16.msra.mxu0 %v338
    %453 = vmatprep.subr.bf16.mxu0 0
    %454 = vmatpush1.bf16.msra.mxu0 %v337
    %455 = vmatprep.subr.bf16.mxu0 0
    %456 = vmatpush2.bf16.msra.mxu0 %v352
    %457 = vmatprep.subr.bf16.mxu0 0
    %458 = vmatpush2.bf16.msra.mxu0 %v351
    %459 = vmatprep.subr.bf16.mxu0 0
    %460 = vmatpush2.bf16.msra.mxu0 %v350
    %461 = vmatprep.subr.bf16.mxu0 0
    %462 = vmatpush2.bf16.msra.mxu0 %v349
    %463 = vmatprep.subr.bf16.mxu0 0
    %464 = vmatpush2.bf16.msra.mxu0 %v348
    %465 = vmatprep.subr.bf16.mxu0 0
    %466 = vmatpush2.bf16.msra.mxu0 %v347
    %467 = vmatprep.subr.bf16.mxu0 0
    %468 = vmatpush2.bf16.msra.mxu0 %v346
    %469 = vmatprep.subr.bf16.mxu0 0
    %470 = vmatpush2.bf16.msra.mxu0 %v345
    %471 = vmatprep.mubr.bf16.mxu0 %v30
    %472 = vmatmul.mubr.bf16.gmra.mxu0 %v29
    %v473 = vpop.f32.mrf.mxu0
    %v474 = vadd.f32 %v139, %v473
    %v475 = vpop.f32.mrf.mxu0
    %v476 = vpop.f32.mrf.mxu0
    %v477 = vpop.f32.mrf.mxu0
    %478 = vdwg.mxu0
    %479 = vmatprep.subr.bf16.mxu0 0
    %480 = vmatpush1.bf16.msra.mxu0 %v360
    %481 = vmatprep.subr.bf16.mxu0 0
    %482 = vmatpush1.bf16.msra.mxu0 %v359
    %483 = vmatprep.subr.bf16.mxu0 0
    %484 = vmatpush1.bf16.msra.mxu0 %v358
    %485 = vmatprep.subr.bf16.mxu0 0
    %486 = vmatpush1.bf16.msra.mxu0 %v357
    %487 = vmatprep.subr.bf16.mxu0 0
    %488 = vmatpush1.bf16.msra.mxu0 %v356
    %489 = vmatprep.subr.bf16.mxu0 0
    %490 = vmatpush1.bf16.msra.mxu0 %v355
    %491 = vmatprep.subr.bf16.mxu0 0
    %492 = vmatpush1.bf16.msra.mxu0 %v354
    %493 = vmatprep.subr.bf16.mxu0 0
    %494 = vmatpush1.bf16.msra.mxu0 %v353
    %495 = vmatprep.subr.bf16.mxu0 0
    %496 = vmatpush2.bf16.msra.mxu0 %v368
    %497 = vmatprep.subr.bf16.mxu0 0
    %498 = vmatpush2.bf16.msra.mxu0 %v367
    %499 = vmatprep.subr.bf16.mxu0 0
    %500 = vmatpush2.bf16.msra.mxu0 %v366
    %501 = vmatprep.subr.bf16.mxu0 0
    %502 = vmatpush2.bf16.msra.mxu0 %v365
    %503 = vmatprep.subr.bf16.mxu0 0
    %504 = vmatpush2.bf16.msra.mxu0 %v364
    %505 = vmatprep.subr.bf16.mxu0 0
    %506 = vmatpush2.bf16.msra.mxu0 %v363
    %507 = vmatprep.subr.bf16.mxu0 0
    %508 = vmatpush2.bf16.msra.mxu0 %v362
    %509 = vmatprep.subr.bf16.mxu0 0
    %510 = vmatpush2.bf16.msra.mxu0 %v361
    %511 = vmatprep.mubr.bf16.mxu0 %v32
    %512 = vmatmul.mubr.bf16.gmra.mxu0 %v31
    %v513 = vpop.f32.mrf.mxu0
    %v514 = vadd.f32 %v474, %v513
    %v515 = vpop.f32.mrf.mxu0
    %v516 = vpop.f32.mrf.mxu0
    %v517 = vpop.f32.mrf.mxu0
    %518 = vdwg.mxu0
    %519 = vmatprep.subr.bf16.mxu0 0
    %520 = vmatpush1.bf16.msra.mxu0 %v376
    %521 = vmatprep.subr.bf16.mxu0 0
    %522 = vmatpush1.bf16.msra.mxu0 %v375
    %523 = vmatprep.subr.bf16.mxu0 0
    %524 = vmatpush1.bf16.msra.mxu0 %v374
    %525 = vmatprep.subr.bf16.mxu0 0
    %526 = vmatpush1.bf16.msra.mxu0 %v373
    %527 = vmatprep.subr.bf16.mxu0 0
    %528 = vmatpush1.bf16.msra.mxu0 %v372
    %529 = vmatprep.subr.bf16.mxu0 0
    %530 = vmatpush1.bf16.msra.mxu0 %v371
    %531 = vmatprep.subr.bf16.mxu0 0
    %532 = vmatpush1.bf16.msra.mxu0 %v370
    %533 = vmatprep.subr.bf16.mxu0 0
    %534 = vmatpush1.bf16.msra.mxu0 %v369
    %535 = vmatprep.subr.bf16.mxu0 0
    %536 = vmatpush2.bf16.msra.mxu0 %v384
    %537 = vmatprep.subr.bf16.mxu0 0
    %538 = vmatpush2.bf16.msra.mxu0 %v383
    %539 = vmatprep.subr.bf16.mxu0 0
    %540 = vmatpush2.bf16.msra.mxu0 %v382
    %541 = vmatprep.subr.bf16.mxu0 0
    %542 = vmatpush2.bf16.msra.mxu0 %v381
    %543 = vmatprep.subr.bf16.mxu0 0
    %544 = vmatpush2.bf16.msra.mxu0 %v380
    %545 = vmatprep.subr.bf16.mxu0 0
    %546 = vmatpush2.bf16.msra.mxu0 %v379
    %547 = vmatprep.subr.bf16.mxu0 0
    %548 = vmatpush2.bf16.msra.mxu0 %v378
    %549 = vmatprep.subr.bf16.mxu0 0
    %550 = vmatpush2.bf16.msra.mxu0 %v377
    %551 = vmatprep.mubr.bf16.mxu0 %v34
    %552 = vmatmul.mubr.bf16.gmra.mxu0 %v33
    %v553 = vpop.f32.mrf.mxu0
    %v554 = vadd.f32 %v514, %v553
    %v555 = vpop.f32.mrf.mxu0
    %v556 = vpop.f32.mrf.mxu0
    %v557 = vpop.f32.mrf.mxu0
    %558 = vdwg.mxu0
    %559 = vmatprep.subr.bf16.mxu0 0
    %560 = vmatpush1.bf16.msra.mxu0 0
    %561 = vmatprep.subr.bf16.mxu0 0
    %562 = vmatpush1.bf16.msra.mxu0 0
    %563 = vmatprep.subr.bf16.mxu0 0
    %564 = vmatpush1.bf16.msra.mxu0 0
    %565 = vmatprep.subr.bf16.mxu0 0
    %566 = vmatpush1.bf16.msra.mxu0 0
    %567 = vmatprep.subr.bf16.mxu0 0
    %568 = vmatpush1.bf16.msra.mxu0 0
    %569 = vmatprep.subr.bf16.mxu0 0
    %570 = vmatpush1.bf16.msra.mxu0 0
    %571 = vmatprep.subr.bf16.mxu0 0
    %572 = vmatpush1.bf16.msra.mxu0 0
    %573 = vmatprep.subr.bf16.mxu0 0
    %574 = vmatpush1.bf16.msra.mxu0 %v385
    %575 = vmatprep.subr.bf16.mxu0 0
    %576 = vmatpush2.bf16.msra.mxu0 0
    %577 = vmatprep.subr.bf16.mxu0 0
    %578 = vmatpush2.bf16.msra.mxu0 0
    %579 = vmatprep.subr.bf16.mxu0 0
    %580 = vmatpush2.bf16.msra.mxu0 0
    %581 = vmatprep.subr.bf16.mxu0 0
    %582 = vmatpush2.bf16.msra.mxu0 0
    %583 = vmatprep.subr.bf16.mxu0 0
    %584 = vmatpush2.bf16.msra.mxu0 0
    %585 = vmatprep.subr.bf16.mxu0 0
    %586 = vmatpush2.bf16.msra.mxu0 0
    %587 = vmatprep.subr.bf16.mxu0 0
    %588 = vmatpush2.bf16.msra.mxu0 0
    %589 = vmatprep.subr.bf16.mxu0 0
    %590 = vmatpush2.bf16.msra.mxu0 0
    %591 = vmatprep.mubr.bf16.mxu0 0
    %592 = vmatmul.mubr.bf16.gmra.mxu0 %v437
    %v593 = vpop.f32.mrf.mxu0
    %v594 = vadd.f32 %v554, %v593
    %v595 = vpop.f32.mrf.mxu0
    %v596 = vpop.f32.mrf.mxu0
    %v597 = vpop.f32.mrf.mxu0
    %598 = vdwg.mxu0
    %vm599 = vcmp.gt.f32.partialorder %v594, 0.0
    %v600 = vmul.f32 %v594, 0.01
    %v601 = vsel %vm599, %v594, %v600
    %v602 = vpack.c.bf16 %v601, %v601
    %v603 = vld [vmem:[%s3] sm:$0xff]
    %v604 = vld [vmem:[%s3 + $0x8] sm:$0xff]
    %v605 = vld [vmem:[%s3 + $0x10] sm:$0xff]
    %v606 = vld [vmem:[%s3 + $0x18] sm:$0xf]
    %v607 = vld [vmem:[%s3 + $0x1c] sm:$0xff]
    %v608 = vld [vmem:[%s3 + $0x24] sm:$0xff]
    %v609 = vld [vmem:[%s3 + $0x2c] sm:$0xff]
    %v610 = vld [vmem:[%s3 + $0x34] sm:$0xf]
    %v611 = vld [vmem:[%s3 + $0x38] sm:$0xff]
    %v612 = vld [vmem:[%s3 + $0x40] sm:$0xff]
    %v613 = vld [vmem:[%s3 + $0x48] sm:$0xff]
    %v614 = vld [vmem:[%s3 + $0x50] sm:$0xf]
    %v615 = vld [vmem:[%s3 + $0x54] sm:$0xff]
    %v616 = vld [vmem:[%s3 + $0x5c] sm:$0xff]
    %v617 = vld [vmem:[%s3 + $0x64] sm:$0xff]
    %v618 = vld [vmem:[%s3 + $0x6c] sm:$0xf]
    %v619 = vld [vmem:[%s3 + $0x70] sm:$0xff]
    %v620 = vld [vmem:[%s3 + $0x78] sm:$0xff]
    %v621 = vld [vmem:[%s3 + $0x80] sm:$0xff]
    %v622 = vld [vmem:[%s3 + $0x88] sm:$0xf]
    %v623 = vld [vmem:[%s3 + $0x8c] sm:$0xff]
    %v624 = vld [vmem:[%s3 + $0x94] sm:$0xff]
    %v625 = vld [vmem:[%s3 + $0x9c] sm:$0xff]
    %v626 = vld [vmem:[%s3 + $0xa4] sm:$0xf]
    %v627 = vld [vmem:[%s3 + $0xa8] sm:$0xff]
    %v628 = vld [vmem:[%s3 + $0xb0] sm:$0xff]
    %v629 = vld [vmem:[%s3 + $0xb8] sm:$0xff]
    %v630 = vld [vmem:[%s3 + $0xc0] sm:$0xf]
    %v631 = vld [vmem:[%s3 + $0xc4] sm:$0xff]
    %v632 = vld [vmem:[%s3 + $0xcc] sm:$0xff]
    %v633 = vld [vmem:[%s3 + $0xd4] sm:$0xff]
    %v634 = vld [vmem:[%s3 + $0xdc] sm:$0xf]
    %v635 = vld [vmem:[%s3 + $0xe0] sm:$0xff]
    %v636 = vld [vmem:[%s3 + $0xe8] sm:$0xff]
    %v637 = vld [vmem:[%s3 + $0xf0] sm:$0xff]
    %v638 = vld [vmem:[%s3 + $0xf8] sm:$0xf]
    %v639 = vld [vmem:[%s3 + $0xfc] sm:$0xff]
    %v640 = vld [vmem:[%s3 + $0x104] sm:$0xff]
    %v641 = vld [vmem:[%s3 + $0x10c] sm:$0xff]
    %v642 = vld [vmem:[%s3 + $0x114] sm:$0xf]
    %v643 = vld [vmem:[%s3 + $0x118] sm:$0xff]
    %v644 = vld [vmem:[%s3 + $0x120] sm:$0xff]
    %v645 = vld [vmem:[%s3 + $0x128] sm:$0xff]
    %v646 = vld [vmem:[%s3 + $0x130] sm:$0xf]
    %v647 = vld [vmem:[%s3 + $0x134] sm:$0xff]
    %v648 = vld [vmem:[%s3 + $0x13c] sm:$0xff]
    %v649 = vld [vmem:[%s3 + $0x144] sm:$0xff]
    %v650 = vld [vmem:[%s3 + $0x14c] sm:$0xf]
    %v651 = vld [vmem:[%s3 + $0x150] sm:$0xff]
    %v652 = vld [vmem:[%s3 + $0x158] sm:$0xff]
    %v653 = vld [vmem:[%s3 + $0x160] sm:$0xff]
    %v654 = vld [vmem:[%s3 + $0x168] sm:$0xf]
    %v655 = vld [vmem:[%s3 + $0x16c] sm:$0xff]
    %v656 = vld [vmem:[%s3 + $0x174] sm:$0xff]
    %v657 = vld [vmem:[%s3 + $0x17c] sm:$0xff]
    %v658 = vld [vmem:[%s3 + $0x184] sm:$0xf]
    %v659 = vld [vmem:[%s3 + $0x188] sm:$0xff]
    %v660 = vld [vmem:[%s3 + $0x190] sm:$0xff]
    %v661 = vld [vmem:[%s3 + $0x198] sm:$0xff]
    %v662 = vld [vmem:[%s3 + $0x1a0] sm:$0xf]
    %v663 = vld [vmem:[%s3 + $0x1a4] sm:$0xff]
    %v664 = vld [vmem:[%s3 + $0x1ac] sm:$0xff]
    %v665 = vld [vmem:[%s3 + $0x1b4] sm:$0xff]
    %v666 = vld [vmem:[%s3 + $0x1bc] sm:$0xf]
    %v667 = vld [vmem:[%s4] sm:$0x7f]
    %v669 = vlaneseq
    %v670 = vshrl.u32 %v669, 7
    %v671 = vsub.s32 0, %v670
    %v672 = vrot.slane %v667, %v671
    %v673 = vlaneseq
    %v674 = vshrl.u32 %v673, 7
    %v675 = vsub.s32 1, %v674
    %v676 = vrot.slane %v667, %v675
    %v677 = vlaneseq
    %v678 = vshrl.u32 %v677, 7
    %v679 = vsub.s32 2, %v678
    %v680 = vrot.slane %v667, %v679
    %v681 = vlaneseq
    %v682 = vshrl.u32 %v681, 7
    %v683 = vsub.s32 3, %v682
    %v684 = vrot.slane %v667, %v683
    %v685 = vlaneseq
    %v686 = vshrl.u32 %v685, 7
    %v687 = vsub.s32 4, %v686
    %v688 = vrot.slane %v667, %v687
    %v689 = vlaneseq
    %v690 = vshrl.u32 %v689, 7
    %v691 = vsub.s32 5, %v690
    %v692 = vrot.slane %v667, %v691
    %v693 = vlaneseq
    %v694 = vshrl.u32 %v693, 7
    %v695 = vsub.s32 6, %v694
    %v696 = vrot.slane %v667, %v695
    %v768 = vunpack.c.l.b16 %v603
    %v769 = vunpack.c.h.b16 %v603
    %v770 = vunpack.c.l.b16 %v604
    %v771 = vunpack.c.h.b16 %v604
    %v772 = vunpack.c.l.b16 %v605
    %v773 = vunpack.c.h.b16 %v605
    %v774 = vunpack.c.l.b16 %v606
    %v775 = vunpack.c.l.b16 %v607
    %v776 = vunpack.c.h.b16 %v607
    %v777 = vunpack.c.l.b16 %v608
    %v778 = vunpack.c.h.b16 %v608
    %v779 = vunpack.c.l.b16 %v609
    %v780 = vunpack.c.h.b16 %v609
    %v781 = vunpack.c.l.b16 %v610
    %v782 = vunpack.c.l.b16 %v611
    %v783 = vunpack.c.h.b16 %v611
    %v784 = vunpack.c.l.b16 %v612
    %v785 = vunpack.c.h.b16 %v612
    %v786 = vunpack.c.l.b16 %v613
    %v787 = vunpack.c.h.b16 %v613
    %v788 = vunpack.c.l.b16 %v614
    %v789 = vunpack.c.l.b16 %v615
    %v790 = vunpack.c.h.b16 %v615
    %v791 = vunpack.c.l.b16 %v616
    %v792 = vunpack.c.h.b16 %v616
    %v793 = vunpack.c.l.b16 %v617
    %v794 = vunpack.c.h.b16 %v617
    %v795 = vunpack.c.l.b16 %v618
    %v796 = vunpack.c.l.b16 %v619
    %v797 = vunpack.c.h.b16 %v619
    %v798 = vunpack.c.l.b16 %v620
    %v799 = vunpack.c.h.b16 %v620
    %v800 = vunpack.c.l.b16 %v621
    %v801 = vunpack.c.h.b16 %v621
    %v802 = vunpack.c.l.b16 %v622
    %v803 = vunpack.c.l.b16 %v623
    %v804 = vunpack.c.h.b16 %v623
    %v805 = vunpack.c.l.b16 %v624
    %v806 = vunpack.c.h.b16 %v624
    %v807 = vunpack.c.l.b16 %v625
    %v808 = vunpack.c.h.b16 %v625
    %v809 = vunpack.c.l.b16 %v626
    %v810 = vunpack.c.l.b16 %v627
    %v811 = vunpack.c.h.b16 %v627
    %v812 = vunpack.c.l.b16 %v628
    %v813 = vunpack.c.h.b16 %v628
    %v814 = vunpack.c.l.b16 %v629
    %v815 = vunpack.c.h.b16 %v629
    %v816 = vunpack.c.l.b16 %v630
    %v817 = vunpack.c.l.b16 %v631
    %v818 = vunpack.c.h.b16 %v631
    %v819 = vunpack.c.l.b16 %v632
    %v820 = vunpack.c.h.b16 %v632
    %v821 = vunpack.c.l.b16 %v633
    %v822 = vunpack.c.h.b16 %v633
    %v823 = vunpack.c.l.b16 %v634
    %v824 = vunpack.c.l.b16 %v635
    %v825 = vunpack.c.h.b16 %v635
    %v826 = vunpack.c.l.b16 %v636
    %v827 = vunpack.c.h.b16 %v636
    %v828 = vunpack.c.l.b16 %v637
    %v829 = vunpack.c.h.b16 %v637
    %v830 = vunpack.c.l.b16 %v638
    %v831 = vunpack.c.l.b16 %v639
    %v832 = vunpack.c.h.b16 %v639
    %v833 = vunpack.c.l.b16 %v640
    %v834 = vunpack.c.h.b16 %v640
    %v835 = vunpack.c.l.b16 %v641
    %v836 = vunpack.c.h.b16 %v641
    %v837 = vunpack.c.l.b16 %v642
    %v838 = vunpack.c.l.b16 %v643
    %v839 = vunpack.c.h.b16 %v643
    %v840 = vunpack.c.l.b16 %v644
    %v841 = vunpack.c.h.b16 %v644
    %v842 = vunpack.c.l.b16 %v645
    %v843 = vunpack.c.h.b16 %v645
    %v844 = vunpack.c.l.b16 %v646
    %v845 = vunpack.c.l.b16 %v647
    %v846 = vunpack.c.h.b16 %v647
    %v847 = vunpack.c.l.b16 %v648
    %v848 = vunpack.c.h.b16 %v648
    %v849 = vunpack.c.l.b16 %v649
    %v850 = vunpack.c.h.b16 %v649
    %v851 = vunpack.c.l.b16 %v650
    %v852 = vunpack.c.l.b16 %v651
    %v853 = vunpack.c.h.b16 %v651
    %v854 = vunpack.c.l.b16 %v652
    %v855 = vunpack.c.h.b16 %v652
    %v856 = vunpack.c.l.b16 %v653
    %v857 = vunpack.c.h.b16 %v653
    %v858 = vunpack.c.l.b16 %v654
    %v859 = vunpack.c.l.b16 %v655
    %v860 = vunpack.c.h.b16 %v655
    %v861 = vunpack.c.l.b16 %v656
    %v862 = vunpack.c.h.b16 %v656
    %v863 = vunpack.c.l.b16 %v657
    %v864 = vunpack.c.h.b16 %v657
    %v865 = vunpack.c.l.b16 %v658
    %v866 = vunpack.c.l.b16 %v659
    %v867 = vunpack.c.h.b16 %v659
    %v868 = vunpack.c.l.b16 %v660
    %v869 = vunpack.c.h.b16 %v660
    %v870 = vunpack.c.l.b16 %v661
    %v871 = vunpack.c.h.b16 %v661
    %v872 = vunpack.c.l.b16 %v662
    %v873 = vunpack.c.l.b16 %v663
    %v874 = vunpack.c.h.b16 %v663
    %v875 = vunpack.c.l.b16 %v664
    %v876 = vunpack.c.h.b16 %v664
    %v877 = vunpack.c.l.b16 %v665
    %v878 = vunpack.c.h.b16 %v665
    %v879 = vunpack.c.l.b16 %v666
    %v880 = vpack.c.b16 %v775, %v768
    %v881 = vpack.c.b16 %v776, %v769
    %v882 = vpack.c.b16 %v777, %v770
    %v883 = vpack.c.b16 %v778, %v771
    %v884 = vpack.c.b16 %v779, %v772
    %v885 = vpack.c.b16 %v780, %v773
    %v886 = vpack.c.b16 %v781, %v774
    %v887 = vpack.c.b16 %v789, %v782
    %v888 = vpack.c.b16 %v790, %v783
    %v889 = vpack.c.b16 %v791, %v784
    %v890 = vpack.c.b16 %v792, %v785
    %v891 = vpack.c.b16 %v793, %v786
    %v892 = vpack.c.b16 %v794, %v787
    %v893 = vpack.c.b16 %v795, %v788
    %v894 = vpack.c.b16 %v803, %v796
    %v895 = vpack.c.b16 %v804, %v797
    %v896 = vpack.c.b16 %v805, %v798
    %v897 = vpack.c.b16 %v806, %v799
    %v898 = vpack.c.b16 %v807, %v800
    %v899 = vpack.c.b16 %v808, %v801
    %v900 = vpack.c.b16 %v809, %v802
    %v901 = vpack.c.b16 %v817, %v810
    %v902 = vpack.c.b16 %v818, %v811
    %v903 = vpack.c.b16 %v819, %v812
    %v904 = vpack.c.b16 %v820, %v813
    %v905 = vpack.c.b16 %v821, %v814
    %v906 = vpack.c.b16 %v822, %v815
    %v907 = vpack.c.b16 %v823, %v816
    %v908 = vpack.c.b16 %v831, %v824
    %v909 = vpack.c.b16 %v832, %v825
    %v910 = vpack.c.b16 %v833, %v826
    %v911 = vpack.c.b16 %v834, %v827
    %v912 = vpack.c.b16 %v835, %v828
    %v913 = vpack.c.b16 %v836, %v829
    %v914 = vpack.c.b16 %v837, %v830
    %v915 = vpack.c.b16 %v845, %v838
    %v916 = vpack.c.b16 %v846, %v839
    %v917 = vpack.c.b16 %v847, %v840
    %v918 = vpack.c.b16 %v848, %v841
    %v919 = vpack.c.b16 %v849, %v842
    %v920 = vpack.c.b16 %v850, %v843
    %v921 = vpack.c.b16 %v851, %v844
    %v922 = vpack.c.b16 %v859, %v852
    %v923 = vpack.c.b16 %v860, %v853
    %v924 = vpack.c.b16 %v861, %v854
    %v925 = vpack.c.b16 %v862, %v855
    %v926 = vpack.c.b16 %v863, %v856
    %v927 = vpack.c.b16 %v864, %v857
    %v928 = vpack.c.b16 %v865, %v858
    %v929 = vpack.c.b16 %v873, %v866
    %v930 = vpack.c.b16 %v874, %v867
    %v931 = vpack.c.b16 %v875, %v868
    %v932 = vpack.c.b16 %v876, %v869
    %v933 = vpack.c.b16 %v877, %v870
    %v934 = vpack.c.b16 %v878, %v871
    %v935 = vpack.c.b16 %v879, %v872
    %992 = vmatprep.subr.bf16.mxu0 %v930
    %993 = vmatpush1.bf16.msra.mxu0 %v929
    %994 = vmatprep.subr.bf16.mxu0 %v923
    %995 = vmatpush1.bf16.msra.mxu0 %v922
    %996 = vmatprep.subr.bf16.mxu0 %v916
    %997 = vmatpush1.bf16.msra.mxu0 %v915
    %998 = vmatprep.subr.bf16.mxu0 %v909
    %999 = vmatpush1.bf16.msra.mxu0 %v908
    %1000 = vmatprep.subr.bf16.mxu0 %v902
    %1001 = vmatpush1.bf16.msra.mxu0 %v901
    %1002 = vmatprep.subr.bf16.mxu0 %v895
    %1003 = vmatpush1.bf16.msra.mxu0 %v894
    %1004 = vmatprep.subr.bf16.mxu0 %v888
    %1005 = vmatpush1.bf16.msra.mxu0 %v887
    %1006 = vmatprep.subr.bf16.mxu0 %v881
    %1007 = vmatpush1.bf16.msra.mxu0 %v880
    %1008 = vmatprep.subr.bf16.mxu0 0
    %1009 = vmatpush2.bf16.msra.mxu0 0
    %1010 = vmatprep.subr.bf16.mxu0 0
    %1011 = vmatpush2.bf16.msra.mxu0 0
    %1012 = vmatprep.subr.bf16.mxu0 0
    %1013 = vmatpush2.bf16.msra.mxu0 0
    %1014 = vmatprep.subr.bf16.mxu0 0
    %1015 = vmatpush2.bf16.msra.mxu0 0
    %1016 = vmatprep.subr.bf16.mxu0 0
    %1017 = vmatpush2.bf16.msra.mxu0 0
    %1018 = vmatprep.subr.bf16.mxu0 0
    %1019 = vmatpush2.bf16.msra.mxu0 0
    %1020 = vmatprep.subr.bf16.mxu0 0
    %1021 = vmatpush2.bf16.msra.mxu0 0
    %1022 = vmatprep.subr.bf16.mxu0 0
    %1023 = vmatpush2.bf16.msra.mxu0 0
    %1024 = vmatprep.mubr.bf16.mxu0 0
    %1025 = vmatmul.mubr.bf16.gmra.mxu0 %v602
    %v1026 = vpop.f32.mrf.mxu0
    %v1027 = vadd.f32 %v672, %v1026
    %v1028 = vpop.f32.mrf.mxu0
    %v1029 = vadd.f32 %v676, %v1028
    %v1030 = vpop.f32.mrf.mxu0
    %v1031 = vpop.f32.mrf.mxu0
    %1032 = vdwg.mxu0
    %1033 = vmatprep.subr.bf16.mxu0 %v932
    %1034 = vmatpush1.bf16.msra.mxu0 %v931
    %1035 = vmatprep.subr.bf16.mxu0 %v925
    %1036 = vmatpush1.bf16.msra.mxu0 %v924
    %1037 = vmatprep.subr.bf16.mxu0 %v918
    %1038 = vmatpush1.bf16.msra.mxu0 %v917
    %1039 = vmatprep.subr.bf16.mxu0 %v911
    %1040 = vmatpush1.bf16.msra.mxu0 %v910
    %1041 = vmatprep.subr.bf16.mxu0 %v904
    %1042 = vmatpush1.bf16.msra.mxu0 %v903
    %1043 = vmatprep.subr.bf16.mxu0 %v897
    %1044 = vmatpush1.bf16.msra.mxu0 %v896
    %1045 = vmatprep.subr.bf16.mxu0 %v890
    %1046 = vmatpush1.bf16.msra.mxu0 %v889
    %1047 = vmatprep.subr.bf16.mxu0 %v883
    %1048 = vmatpush1.bf16.msra.mxu0 %v882
    %1049 = vmatprep.subr.bf16.mxu0 0
    %1050 = vmatpush2.bf16.msra.mxu0 0
    %1051 = vmatprep.subr.bf16.mxu0 0
    %1052 = vmatpush2.bf16.msra.mxu0 0
    %1053 = vmatprep.subr.bf16.mxu0 0
    %1054 = vmatpush2.bf16.msra.mxu0 0
    %1055 = vmatprep.subr.bf16.mxu0 0
    %1056 = vmatpush2.bf16.msra.mxu0 0
    %1057 = vmatprep.subr.bf16.mxu0 0
    %1058 = vmatpush2.bf16.msra.mxu0 0
    %1059 = vmatprep.subr.bf16.mxu0 0
    %1060 = vmatpush2.bf16.msra.mxu0 0
    %1061 = vmatprep.subr.bf16.mxu0 0
    %1062 = vmatpush2.bf16.msra.mxu0 0
    %1063 = vmatprep.subr.bf16.mxu0 0
    %1064 = vmatpush2.bf16.msra.mxu0 0
    %1065 = vmatprep.mubr.bf16.mxu0 0
    %1066 = vmatmul.mubr.bf16.gmra.mxu0 %v602
    %v1067 = vpop.f32.mrf.mxu0
    %v1068 = vadd.f32 %v680, %v1067
    %v1069 = vpop.f32.mrf.mxu0
    %v1070 = vadd.f32 %v684, %v1069
    %v1071 = vpop.f32.mrf.mxu0
    %v1072 = vpop.f32.mrf.mxu0
    %1073 = vdwg.mxu0
    %1074 = vmatprep.subr.bf16.mxu0 %v934
    %1075 = vmatpush1.bf16.msra.mxu0 %v933
    %1076 = vmatprep.subr.bf16.mxu0 %v927
    %1077 = vmatpush1.bf16.msra.mxu0 %v926
    %1078 = vmatprep.subr.bf16.mxu0 %v920
    %1079 = vmatpush1.bf16.msra.mxu0 %v919
    %1080 = vmatprep.subr.bf16.mxu0 %v913
    %1081 = vmatpush1.bf16.msra.mxu0 %v912
    %1082 = vmatprep.subr.bf16.mxu0 %v906
    %1083 = vmatpush1.bf16.msra.mxu0 %v905
    %1084 = vmatprep.subr.bf16.mxu0 %v899
    %1085 = vmatpush1.bf16.msra.mxu0 %v898
    %1086 = vmatprep.subr.bf16.mxu0 %v892
    %1087 = vmatpush1.bf16.msra.mxu0 %v891
    %1088 = vmatprep.subr.bf16.mxu0 %v885
    %1089 = vmatpush1.bf16.msra.mxu0 %v884
    %1090 = vmatprep.subr.bf16.mxu0 0
    %1091 = vmatpush2.bf16.msra.mxu0 0
    %1092 = vmatprep.subr.bf16.mxu0 0
    %1093 = vmatpush2.bf16.msra.mxu0 0
    %1094 = vmatprep.subr.bf16.mxu0 0
    %1095 = vmatpush2.bf16.msra.mxu0 0
    %1096 = vmatprep.subr.bf16.mxu0 0
    %1097 = vmatpush2.bf16.msra.mxu0 0
    %1098 = vmatprep.subr.bf16.mxu0 0
    %1099 = vmatpush2.bf16.msra.mxu0 0
    %1100 = vmatprep.subr.bf16.mxu0 0
    %1101 = vmatpush2.bf16.msra.mxu0 0
    %1102 = vmatprep.subr.bf16.mxu0 0
    %1103 = vmatpush2.bf16.msra.mxu0 0
    %1104 = vmatprep.subr.bf16.mxu0 0
    %1105 = vmatpush2.bf16.msra.mxu0 0
    %1106 = vmatprep.mubr.bf16.mxu0 0
    %1107 = vmatmul.mubr.bf16.gmra.mxu0 %v602
    %v1108 = vpop.f32.mrf.mxu0
    %v1109 = vadd.f32 %v688, %v1108
    %v1110 = vpop.f32.mrf.mxu0
    %v1111 = vadd.f32 %v692, %v1110
    %v1112 = vpop.f32.mrf.mxu0
    %v1113 = vpop.f32.mrf.mxu0
    %1114 = vdwg.mxu0
    %1115 = vmatprep.subr.bf16.mxu0 0
    %1116 = vmatpush1.bf16.msra.mxu0 %v935
    %1117 = vmatprep.subr.bf16.mxu0 0
    %1118 = vmatpush1.bf16.msra.mxu0 %v928
    %1119 = vmatprep.subr.bf16.mxu0 0
    %1120 = vmatpush1.bf16.msra.mxu0 %v921
    %1121 = vmatprep.subr.bf16.mxu0 0
    %1122 = vmatpush1.bf16.msra.mxu0 %v914
    %1123 = vmatprep.subr.bf16.mxu0 0
    %1124 = vmatpush1.bf16.msra.mxu0 %v907
    %1125 = vmatprep.subr.bf16.mxu0 0
    %1126 = vmatpush1.bf16.msra.mxu0 %v900
    %1127 = vmatprep.subr.bf16.mxu0 0
    %1128 = vmatpush1.bf16.msra.mxu0 %v893
    %1129 = vmatprep.subr.bf16.mxu0 0
    %1130 = vmatpush1.bf16.msra.mxu0 %v886
    %1131 = vmatprep.subr.bf16.mxu0 0
    %1132 = vmatpush2.bf16.msra.mxu0 0
    %1133 = vmatprep.subr.bf16.mxu0 0
    %1134 = vmatpush2.bf16.msra.mxu0 0
    %1135 = vmatprep.subr.bf16.mxu0 0
    %1136 = vmatpush2.bf16.msra.mxu0 0
    %1137 = vmatprep.subr.bf16.mxu0 0
    %1138 = vmatpush2.bf16.msra.mxu0 0
    %1139 = vmatprep.subr.bf16.mxu0 0
    %1140 = vmatpush2.bf16.msra.mxu0 0
    %1141 = vmatprep.subr.bf16.mxu0 0
    %1142 = vmatpush2.bf16.msra.mxu0 0
    %1143 = vmatprep.subr.bf16.mxu0 0
    %1144 = vmatpush2.bf16.msra.mxu0 0
    %1145 = vmatprep.subr.bf16.mxu0 0
    %1146 = vmatpush2.bf16.msra.mxu0 0
    %1147 = vmatprep.mubr.bf16.mxu0 0
    %1148 = vmatmul.mubr.bf16.gmra.mxu0 %v602
    %v1149 = vpop.f32.mrf.mxu0
    %v1150 = vadd.f32 %v696, %v1149
    %v1151 = vpop.f32.mrf.mxu0
    %v1152 = vpop.f32.mrf.mxu0
    %v1153 = vpop.f32.mrf.mxu0
    %1154 = vdwg.mxu0
    %v1155 = vxor.u32 %v1027, 2147483648
    %v1156 = vxor.u32 %v1029, 2147483648
    %v1157 = vxor.u32 %v1068, 2147483648
    %v1158 = vxor.u32 %v1070, 2147483648
    %v1159 = vxor.u32 %v1109, 2147483648
    %v1160 = vxor.u32 %v1111, 2147483648
    %v1161 = vxor.u32 %v1150, 2147483648
    %v1162 = vmul.f32 %v1155, 1.442695
    %v1163 = vpow.pop %v1162
    %v1164 = vmul.f32 %v1156, 1.442695
    %v1165 = vpow.pop %v1164
    %v1166 = vmul.f32 %v1157, 1.442695
    %v1167 = vpow.pop %v1166
    %v1168 = vmul.f32 %v1158, 1.442695
    %v1169 = vpow.pop %v1168
    %v1170 = vmul.f32 %v1159, 1.442695
    %v1171 = vpow.pop %v1170
    %v1172 = vmul.f32 %v1160, 1.442695
    %v1173 = vpow.pop %v1172
    %v1174 = vmul.f32 %v1161, 1.442695
    %v1175 = vpow.pop %v1174
    %v1176 = vadd.f32 %v1163, 1.0
    %v1177 = vadd.f32 %v1165, 1.0
    %v1178 = vadd.f32 %v1167, 1.0
    %v1179 = vadd.f32 %v1169, 1.0
    %v1180 = vadd.f32 %v1171, 1.0
    %v1181 = vadd.f32 %v1173, 1.0
    %v1182 = vadd.f32 %v1175, 1.0
    %v1183 = vrcp.pop %v1176
    %v1184 = vmul.f32 1.0, %v1183
    %v1185 = vrcp.pop %v1177
    %v1186 = vmul.f32 1.0, %v1185
    %v1187 = vrcp.pop %v1178
    %v1188 = vmul.f32 1.0, %v1187
    %v1189 = vrcp.pop %v1179
    %v1190 = vmul.f32 1.0, %v1189
    %v1191 = vrcp.pop %v1180
    %v1192 = vmul.f32 1.0, %v1191
    %v1193 = vrcp.pop %v1181
    %v1194 = vmul.f32 1.0, %v1193
    %v1195 = vrcp.pop %v1182
    %v1196 = vmul.f32 1.0, %v1195
    %1197 = vst [vmem:[#allocation2] sm:$0xff] %v1184
    %1198 = vst [vmem:[#allocation2 + $0x8] sm:$0xff] %v1186
    %1199 = vst [vmem:[#allocation2 + $0x10] sm:$0xff] %v1188
    %1200 = vst [vmem:[#allocation2 + $0x18] sm:$0xff] %v1190
    %1201 = vst [vmem:[#allocation2 + $0x20] sm:$0xff] %v1192
    %1202 = vst [vmem:[#allocation2 + $0x28] sm:$0xff] %v1194
    %1203 = vst.msk [vmem:[#allocation2 + $0x30] sm:$0xff] %vm435, %v1196
    // Predicated region
    $region22: #{_autoencoder_forward_impl.1} parent=1 // pred_check
      _
    $region23: #{_autoencoder_forward_impl.1} parent=1 // pred_check_branch
      %1205 = sbr.rel (0) target = $region25
    $region24: #{_autoencoder_forward_impl.1} parent=1 // pred_region
      %s1207 = ssub.s32 896, 896
      %1208 = vsyncadd [#allocation3], %s1207
      %s1210 = sshll.u32 [#allocation2], 4
      %s1211 = int_to_ptr.vmem [resolvable:$true] %s1210
      %1213 = dma.vmem_to_hbm [thread:$0]  %s1211, 896, %s5, [#allocation3]
    $region25: #{_autoencoder_forward_impl.1} parent=1 // pred_fallthru
      _
    // Predicated region
    $region26: #{_autoencoder_forward_impl.1} parent=1 // pred_check
      _
    $region27: #{_autoencoder_forward_impl.1} parent=1 // pred_check_branch
      %1215 = sbr.rel (0) target = $region29
    $region28: #{_autoencoder_forward_impl.1} parent=1 // pred_region
      %1216 = dma.done [#allocation3], 896
    $region29: #{_autoencoder_forward_impl.1} parent=1 // pred_fallthru
      _
    %1217 = vsyncpa [#allocation3], 1

</llo_original>
